<compile_context>
chip_gen: v7x
topology: tpu7x:2x2x1
jax: 0.10.0
libtpu: 0.0.40
codegen_flags: <defaults>
</compile_context>

<pallas_src>
import functools

import jax
import jax.numpy as jnp
from jax.experimental import pallas as pl
from jax.experimental.pallas import tpu as pltpu


# ---------------------------------------------------------------------------
# Kernel body
# ---------------------------------------------------------------------------
def film_kernel(x_ref, cond_ref, wf_ref, bf_ref, out_ref, *, tf, tfp, bf16_mod):
    """One (batch-tile, feature-tile): fused gamma/beta projection + modulation."""
    cond = cond_ref[...]                                                  # (tb, C)
    # Single MXU pass producing [gamma | beta] for this feature tile; f32 acc.
    fused = jnp.dot(cond, wf_ref[...],
                    preferred_element_type=jnp.float32) + bf_ref[...]     # (tb, 2*tfp)
    gamma = fused[:, :tf]                   # starts at lane 0   (128-aligned)
    beta = fused[:, tfp:tfp + tf]           # starts at lane tfp (128-aligned)
    if bf16_mod:
        # bf16 modulation path (v6e/v7x have bf16 VALU): halves vreg pressure
        # and the elementwise intermediate footprint; accumulation stayed f32.
        out_ref[...] = (x_ref[...] * gamma.astype(jnp.bfloat16)
                        + beta.astype(jnp.bfloat16)).astype(out_ref.dtype)
    else:
        out_ref[...] = (x_ref[...].astype(jnp.float32) * gamma
                        + beta).astype(out_ref.dtype)


# ---------------------------------------------------------------------------
# Tiling / VMEM helpers
# ---------------------------------------------------------------------------
def _round_up(x, m):
    return ((x + m - 1) // m) * m


@functools.lru_cache(maxsize=None)
def _vmem_budget():
    """(vmem_limit_bytes, tile_budget_bytes), generation-aware with fallback."""
    try:
        cap = int(pltpu.get_tpu_info().vmem_capacity_bytes)
    except Exception:
        cap = 64 * 1024 * 1024      # conservative: assume v7x-sized VMEM
    limit = min(cap // 2, 64 * 1024 * 1024)     # v7x: 32 MiB, v5e/v6e: 64 MiB
    limit = max(limit, 16 * 1024 * 1024)
    budget = (limit * 5) // 8                    # headroom for compiler scratch
    return limit, budget


def _choose_feature_tile(F):
    """128-lane-aligned feature tile when possible; otherwise full extent."""
    if F % 128 == 0:
        if F <= 2048:
            return F
        for cand in (2048, 1024, 512, 256, 128):
            if F % cand == 0:
                return cand
    # TODO(synk): a huge F that is not a multiple of 128 would need wrapper-side
    # feature padding to tile; feature_dim in this model is small (128/256).
    return F


def _choose_batch_tile(B, nf, tf, tfp, C, x_item, cond_item, w_item, budget):
    """Largest batch tile whose blocks + f32 intermediates fit the VMEM budget."""

    def footprint(tb):
        blocks = (2 * tb * tf * x_item                 # x tile + out tile
                  + tb * C * cond_item                 # condition tile
                  + (C + 1) * 2 * tfp * w_item)        # fused weight + bias tile
        inter = (tb * 2 * tfp * 4                      # f32 fused matmul result
                 + 2 * tb * tf * 4)                    # elementwise temporaries
        return 2 * blocks + inter                      # blocks are double-buffered

    tb = 8
    for cand in (2048, 1024, 512, 256, 128, 64, 32, 16, 8):
        if footprint(cand) <= budget:
            tb = cand
            break
    if tb >= B:
        tb = B          # single full-extent batch block (legal for any B)
    # v7x has two TensorCores: guarantee >= 2 grid iterations along a parallel
    # axis when possible so work can be sharded; no-op on v5e/v6e.
    if pl.cdiv(B, tb) * nf < 2 and B >= 16:
        tb = max(8, _round_up(pl.cdiv(B, 2), 8))
    return tb


# ---------------------------------------------------------------------------
# One-time parameter packing (hoisted out of the per-forward path)
# ---------------------------------------------------------------------------
def pack_film_params(w_gamma, b_gamma, w_beta, b_beta):
    """Pack per feature tile: block j = [Wg_j (pad to 128) | Wb_j (pad to 128)].

    w_*: (C, F) (already transposed for x @ W), b_*: (F,) or (1, F).
    Call once; weights are static across forward calls.
    """
    C, F = w_gamma.shape
    tf = _choose_feature_tile(F)
    tfp = _round_up(tf, 128)
    nf = F // tf
    b_gamma = jnp.asarray(b_gamma).reshape(1, F)
    b_beta = jnp.asarray(b_beta).reshape(1, F)

    def interleave(g, b, rows):
        g = g.reshape(rows, nf, tf)
        b = b.reshape(rows, nf, tf)
        if tfp != tf:
            pad = ((0, 0), (0, 0), (0, tfp - tf))
            g = jnp.pad(g, pad)
            b = jnp.pad(b, pad)
        return jnp.concatenate([g, b], axis=2).reshape(rows, nf * 2 * tfp)

    return {
        "w_fused": interleave(w_gamma, w_beta, C),
        "b_fused": interleave(b_gamma, b_beta, 1),
        "tf": tf, "tfp": tfp, "feature_dim": F, "condition_dim": C,
    }


# ---------------------------------------------------------------------------
# Forward wrapper
# ---------------------------------------------------------------------------
def film_forward(x, condition, params):
    """x: (B, F), condition: (B, C), params: from pack_film_params()."""
    B, F = x.shape
    Bc, C = condition.shape
    assert Bc == B and F == params["feature_dim"] and C == params["condition_dim"]

    tf, tfp = params["tf"], params["tfp"]
    nf = F // tf
    w_fused, b_fused = params["w_fused"], params["b_fused"]

    vmem_limit, budget = _vmem_budget()
    tb = _choose_batch_tile(B, nf, tf, tfp, C,
                            x.dtype.itemsize, condition.dtype.itemsize,
                            w_fused.dtype.itemsize, budget)
    grid = (pl.cdiv(B, tb), nf)          # partial last batch block: no jnp.pad
    bf16_mod = (x.dtype == jnp.bfloat16)

    # Advisory cost estimate: tiny matmul + memory-bound elementwise stream.
    flops = 2 * B * C * (2 * tfp * nf) + 2 * B * F
    bytes_accessed = (2 * B * F * x.dtype.itemsize                 # x read + out write
                      + B * C * condition.dtype.itemsize           # condition read
                      + (C + 1) * 2 * tfp * nf * w_fused.dtype.itemsize)

    return pl.pallas_call(
        functools.partial(film_kernel, tf=tf, tfp=tfp, bf16_mod=bf16_mod),
        out_shape=jax.ShapeDtypeStruct((B, F), x.dtype),
        grid_spec=pltpu.PrefetchScalarGridSpec(
            num_scalar_prefetch=0,
            grid=grid,
            in_specs=[
                # Optional (v5e/v6e, where headroom exists): sweep
                # pipeline_mode=pl.Buffered(3) on the x/out specs for this pure
                # streaming kernel — verify with a sweep, not assumed here.
                pl.BlockSpec((tb, tf), lambda i, j: (i, j)),        # x tile
                pl.BlockSpec((tb, C), lambda i, j: (i, 0)),         # condition tile
                pl.BlockSpec((C, 2 * tfp), lambda i, j: (0, j)),    # fused [Wg|Wb] tile
                pl.BlockSpec((1, 2 * tfp), lambda i, j: (0, j)),    # fused [bg|bb] tile
            ],
            out_specs=pl.BlockSpec((tb, tf), lambda i, j: (i, j)),
        ),
        compiler_params=pltpu.CompilerParams(
            # Both axes independent -> megacore sharding on v7x, no-op elsewhere.
            dimension_semantics=("parallel", "parallel"),
            vmem_limit_bytes=vmem_limit,
        ),
        cost_estimate=pl.CostEstimate(
            flops=flops, transcendentals=0, bytes_accessed=bytes_accessed),
    )(x, condition, w_fused, b_fused)


# ---------------------------------------------------------------------------
# Pure-JAX reference
# ---------------------------------------------------------------------------
def film_ref(x, condition, w_gamma, b_gamma, w_beta, b_beta):
    gamma = condition @ w_gamma + b_gamma.reshape(1, -1)
    beta = condition @ w_beta + b_beta.reshape(1, -1)
    return x * gamma + beta


if __name__ == "__main__":
    # Shapes consistent with the module: feature_dim=128, condition_dim=32.
    B, F, C = 8, 128, 32

    key = jax.random.PRNGKey(0)
    kx, kc, kwg, kbg, kwb, kbb, kx2, kc2 = jax.random.split(key, 8)

    x = jax.random.normal(kx, (B, F), dtype=jnp.float32)
    condition = jax.random.normal(kc, (B, C), dtype=jnp.float32)

    # Deterministic parameter init (uniform, PyTorch-Linear-like scale 1/sqrt(C)).
    bound = 1.0 / jnp.sqrt(jnp.float32(C))
    w_gamma = jax.random.uniform(kwg, (C, F), jnp.float32, -bound, bound)
    b_gamma = jax.random.uniform(kbg, (1, F), jnp.float32, -bound, bound)
    w_beta = jax.random.uniform(kwb, (C, F), jnp.float32, -bound, bound)
    b_beta = jax.random.uniform(kbb, (1, F), jnp.float32, -bound, bound)

    # One-time packing (static across calls).
    params = pack_film_params(w_gamma, b_gamma, w_beta, b_beta)

    # --- f32 path, exact-division grid -------------------------------------
    out = jax.block_until_ready(film_forward(x, condition, params))
    ref = film_ref(x, condition, w_gamma, b_gamma, w_beta, b_beta)
    assert out.shape == (B, F)
    assert jnp.allclose(out, ref, atol=1e-5, rtol=1e-5), "f32 mismatch vs reference"

    # --- bf16 path, ragged batch (exercises cdiv partial block + TC split) --
    B2 = 20
    x2 = jax.random.normal(kx2, (B2, F), dtype=jnp.bfloat16)
    c2 = jax.random.normal(kc2, (B2, C), dtype=jnp.bfloat16)
    out2 = jax.block_until_ready(film_forward(x2, c2, params))
    ref2 = film_ref(x2.astype(jnp.float32), c2.astype(jnp.float32),
                    w_gamma, b_gamma, w_beta, b_beta)
    assert out2.shape == (B2, F)
    assert jnp.allclose(out2.astype(jnp.float32), ref2, atol=5e-2, rtol=5e-2), \
        "bf16 mismatch vs reference"

    print("KERNEL_OK")
</pallas_src>

<mosaic_0001>
module attributes {stable_mosaic.version = 11 : i64} {
  func.func @film_kernel(%arg0: i32, %arg1: i32, %arg2: memref<8x128xf32, #tpu.memory_space<vmem>>, %arg3: memref<8x32xf32, #tpu.memory_space<vmem>>, %arg4: memref<32x256xf32, #tpu.memory_space<vmem>>, %arg5: memref<1x256xf32, #tpu.memory_space<vmem>>, %arg6: memref<8x128xf32, #tpu.memory_space<vmem>>) attributes {dimension_semantics = [#tpu.dimension_semantics<parallel>, #tpu.dimension_semantics<parallel>], iteration_bounds = array<i64: 1, 1>, scalar_prefetch = 0 : i64, scratch_operands = 0 : i64, tpu.core_type = #tpu.core_type<tc>, window_params = [{transform_indices = @transform_0, window_bounds = array<i64: 8, 128>}, {transform_indices = @transform_1, window_bounds = array<i64: 8, 32>}, {transform_indices = @transform_2, window_bounds = array<i64: 32, 256>}, {transform_indices = @transform_3, window_bounds = array<i64: 1, 256>}, {transform_indices = @transform_4, window_bounds = array<i64: 8, 128>}]} {
    %c0 = arith.constant 0 : index
    %c0_0 = arith.constant 0 : index
    %0 = vector.load %arg3[%c0, %c0_0] : memref<8x32xf32, #tpu.memory_space<vmem>>, vector<8x32xf32>
    %c0_1 = arith.constant 0 : index
    %c0_2 = arith.constant 0 : index
    %1 = vector.load %arg4[%c0_1, %c0_2] : memref<32x256xf32, #tpu.memory_space<vmem>>, vector<32x256xf32>
    %cst = arith.constant dense<0.000000e+00> : vector<8x256xf32>
    %2 = tpu.matmul %0, %1, %cst {dimension_numbers = #tpu.dot_dimension_numbers<[1], [0], [0], [1], [0, 0, 1, 1], [], []>} : vector<8x32xf32>, vector<32x256xf32>, vector<8x256xf32> -> vector<8x256xf32>
    %c0_3 = arith.constant 0 : index
    %c0_4 = arith.constant 0 : index
    %3 = vector.load %arg5[%c0_3, %c0_4] : memref<1x256xf32, #tpu.memory_space<vmem>>, vector<1x256xf32>
    %4 = vector.broadcast %3 : vector<1x256xf32> to vector<8x256xf32>
    %5 = arith.addf %2, %4 : vector<8x256xf32>
    %6 = vector.extract_strided_slice %5 {offsets = [0, 0], sizes = [8, 128], strides = [1, 1]} : vector<8x256xf32> to vector<8x128xf32>
    %7 = vector.extract_strided_slice %5 {offsets = [0, 128], sizes = [8, 128], strides = [1, 1]} : vector<8x256xf32> to vector<8x128xf32>
    %c0_5 = arith.constant 0 : index
    %c0_6 = arith.constant 0 : index
    %8 = vector.load %arg2[%c0_5, %c0_6] : memref<8x128xf32, #tpu.memory_space<vmem>>, vector<8x128xf32>
    %9 = arith.mulf %8, %6 : vector<8x128xf32>
    %10 = arith.addf %9, %7 : vector<8x128xf32>
    %c0_7 = arith.constant 0 : index
    %c0_8 = arith.constant 0 : index
    %11 = vector.load %arg6[%c0_7, %c0_8] : memref<8x128xf32, #tpu.memory_space<vmem>>, vector<8x128xf32>
    tpu.vector_store %arg6[%c0_7, %c0_8], %10 {strides = array<i32>} : memref<8x128xf32, #tpu.memory_space<vmem>>, vector<8x128xf32>,
    return
  }
  func.func @transform_0(%arg0: i32, %arg1: i32) -> (i32, i32) {
    %c0_i32 = arith.constant 0 : i32
    return %arg0, %arg1 : i32, i32
  }
  func.func @transform_1(%arg0: i32, %arg1: i32) -> (i32, i32) {
    %c0_i32 = arith.constant 0 : i32
    %c0_i32_0 = arith.constant 0 : i32
    return %arg0, %c0_i32 : i32, i32
  }
  func.func @transform_2(%arg0: i32, %arg1: i32) -> (i32, i32) {
    %c0_i32 = arith.constant 0 : i32
    %c0_i32_0 = arith.constant 0 : i32
    return %c0_i32, %arg1 : i32, i32
  }
  func.func @transform_3(%arg0: i32, %arg1: i32) -> (i32, i32) {
    %c0_i32 = arith.constant 0 : i32
    %c0_i32_0 = arith.constant 0 : i32
    return %c0_i32, %arg1 : i32, i32
  }
  func.func @transform_4(%arg0: i32, %arg1: i32) -> (i32, i32) {
    %c0_i32 = arith.constant 0 : i32
    return %arg0, %arg1 : i32, i32
  }
}

</mosaic_0001>

<llo_original>
// kernel: tpu_custom_call.1
$region0: #{tpu_custom_call.1}
  #allocation0 [shape = 'u32[]', space=smem, size = 0x4, offset = 0x4, fixed_abs, tag = 'smem constant byte address 0x4 - core index']
  #allocation1 [shape = 'u32[144,128]{1,0:T(1,128)}', space=vmem, size = 0x12000, scoped, tag = 'internal scratch']
  %s0 = inlined_call_operand.hbm [shape: f32[8,128], index: 0, kind: input, shape index: {}]
  %s1 = inlined_call_operand.hbm [shape: f32[8,32], index: 1, kind: input, shape index: {}]
  %s2 = inlined_call_operand.hbm [shape: f32[32,256], index: 2, kind: input, shape index: {}]
  %s3 = inlined_call_operand.vmem [shape: f32[1,256], index: 3, kind: input, shape index: {}]
  %s4 = inlined_call_operand.hbm [shape: f32[8,128], index: 4, kind: output, shape index: {}]
  %s5 = sld [smem:[#allocation0]]
  $region38: #{tpu_custom_call.1} parent=0
    _
  %s7 = ssub.s32 1, %s5
  %s8 = scalar_select 0, %s7, %s5
  $region1: #{tpu_custom_call.1} parent=0
    #allocation2 [shape = 'u8[4096]{0}', space=vmem, size = 0x1000, scoped, tag = 'input window, operand 0, single buffered']
    #allocation3 [shape = 's32[1]{0}', space=sflag, size = 0x4, scoped, tag = 'scoped memory for tpu_custom_call.1']
    #allocation4 [shape = 's32[1]{0}', space=sflag, size = 0x4, scoped, tag = 'scoped memory for tpu_custom_call.1']
    #allocation5 [shape = 'u8[4096]{0}', space=vmem, size = 0x1000, scoped, tag = 'input window, operand 1, single buffered']
    #allocation6 [shape = 's32[1]{0}', space=sflag, size = 0x4, scoped, tag = 'scoped memory for tpu_custom_call.1']
    #allocation7 [shape = 'u8[32768]{0}', space=vmem, size = 0x8000, scoped, tag = 'input window, operand 2, single buffered']
    #allocation8 [shape = 'u8[4096]{0}', space=vmem, size = 0x1000, scoped, tag = 'output window, operand 0, single buffered']
    %9 = vsyncpa [#allocation3], 0
    %10 = vsyncpa [#allocation6], 0
    %11 = vsyncpa [#allocation4], 0
    // Predicated region
    $region2: #{tpu_custom_call.1} parent=1 // pred_check
      _
    $region3: #{tpu_custom_call.1} parent=1 // pred_check_branch
      %13 = sbr.rel (0) target = $region5
    $region4: #{tpu_custom_call.1} parent=1 // pred_region
      %s15 = ssub.s32 128, 128
      %16 = vsyncadd [#allocation3], %s15
      %s18 = sshll.u32 [#allocation2], 4
      %s19 = int_to_ptr.vmem [resolvable:$true] %s18
      %21 = dma.hbm_to_vmem [thread:$0]  %s0, 128, %s19, [#allocation3]
    $region5: #{tpu_custom_call.1} parent=1 // pred_fallthru
      _
    // Predicated region
    $region6: #{tpu_custom_call.1} parent=1 // pred_check
      _
    $region7: #{tpu_custom_call.1} parent=1 // pred_check_branch
      %23 = sbr.rel (0) target = $region9
    $region8: #{tpu_custom_call.1} parent=1 // pred_region
      %s25 = ssub.s32 128, 128
      %26 = vsyncadd [#allocation6], %s25
      %s28 = sshll.u32 [#allocation5], 4
      %s29 = int_to_ptr.vmem [resolvable:$true] %s28
      %31 = dma.hbm_to_vmem [thread:$0]  %s1, 128, %s29, [#allocation6]
    $region9: #{tpu_custom_call.1} parent=1 // pred_fallthru
      _
    // Predicated region
    $region10: #{tpu_custom_call.1} parent=1 // pred_check
      _
    $region11: #{tpu_custom_call.1} parent=1 // pred_check_branch
      %33 = sbr.rel (0) target = $region13
    $region12: #{tpu_custom_call.1} parent=1 // pred_region
      %s35 = ssub.s32 1024, 1024
      %36 = vsyncadd [#allocation6], %s35
      %s37 = sshll.u32 [#allocation7], 4
      %s38 = int_to_ptr.vmem [resolvable:$true] %s37
      %43 = dma.hbm_to_vmem [thread:$0]  %s2, 1024, %s38, [#allocation6], 256, 256, 16
    $region13: #{tpu_custom_call.1} parent=1 // pred_fallthru
      _
    // Predicated region
    $region14: #{tpu_custom_call.1} parent=1 // pred_check
      _
    $region15: #{tpu_custom_call.1} parent=1 // pred_check_branch
      %45 = sbr.rel (0) target = $region17
    $region16: #{tpu_custom_call.1} parent=1 // pred_region
      _
    $region17: #{tpu_custom_call.1} parent=1 // pred_fallthru
      _
    // Predicated region
    $region18: #{tpu_custom_call.1} parent=1 // pred_check
      _
    $region19: #{tpu_custom_call.1} parent=1 // pred_check_branch
      %47 = sbr.rel (0) target = $region21
    $region20: #{tpu_custom_call.1} parent=1 // pred_region
      %48 = dma.done [#allocation3], 128
    $region21: #{tpu_custom_call.1} parent=1 // pred_fallthru
      _
    // Predicated region
    $region22: #{tpu_custom_call.1} parent=1 // pred_check
      _
    $region23: #{tpu_custom_call.1} parent=1 // pred_check_branch
      %50 = sbr.rel (0) target = $region25
    $region24: #{tpu_custom_call.1} parent=1 // pred_region
      %51 = dma.done [#allocation6], 128
    $region25: #{tpu_custom_call.1} parent=1 // pred_fallthru
      _
    // Predicated region
    $region26: #{tpu_custom_call.1} parent=1 // pred_check
      _
    $region27: #{tpu_custom_call.1} parent=1 // pred_check_branch
      %53 = sbr.rel (0) target = $region29
    $region28: #{tpu_custom_call.1} parent=1 // pred_region
      %54 = dma.done [#allocation6], 1024
    $region29: #{tpu_custom_call.1} parent=1 // pred_fallthru
      _
    %v55 = vld [vmem:[#allocation5] sm:$0xff]
    %v56 = vld [vmem:[#allocation7] sm:$0xff]
    %v57 = vld [vmem:[#allocation7 + $0x8] sm:$0xff]
    %v58 = vld [vmem:[#allocation7 + $0x10] sm:$0xff]
    %v59 = vld [vmem:[#allocation7 + $0x18] sm:$0xff]
    %v60 = vld [vmem:[#allocation7 + $0x20] sm:$0xff]
    %v61 = vld [vmem:[#allocation7 + $0x28] sm:$0xff]
    %v62 = vld [vmem:[#allocation7 + $0x30] sm:$0xff]
    %v63 = vld [vmem:[#allocation7 + $0x38] sm:$0xff]
    %v64 = vld [vmem:[%s3] sm:$0x3]
    %v66 = vlaneseq
    %v67 = vshrl.u32 %v66, 7
    %v68 = vsub.s32 0, %v67
    %v69 = vrot.slane %v64, %v68
    %v70 = vlaneseq
    %v71 = vshrl.u32 %v70, 7
    %v72 = vsub.s32 1, %v71
    %v73 = vrot.slane %v64, %v72
    %vm76 = vcmask 261120
    %v78 = vsel %vm76, %v55, 0
    %80 = vmatprep.subr.mxu0 %v57
    %81 = vmatpush1.msra.mxu0 %v56
    %82 = vmatprep.subr.mxu0 %v59
    %83 = vmatpush1.msra.mxu0 %v58
    %84 = vmatprep.subr.mxu0 %v61
    %85 = vmatpush1.msra.mxu0 %v60
    %86 = vmatprep.subr.mxu0 %v63
    %87 = vmatpush1.msra.mxu0 %v62
    %88 = vmatprep.subr.mxu0 0.0
    %89 = vmatpush1.msra.mxu0 0.0
    %90 = vmatprep.subr.mxu0 0.0
    %91 = vmatpush1.msra.mxu0 0.0
    %92 = vmatprep.subr.mxu0 0.0
    %93 = vmatpush1.msra.mxu0 0.0
    %94 = vmatprep.subr.mxu0 0.0
    %95 = vmatpush1.msra.mxu0 0.0
    %96 = vmatprep.subr.mxu0 0.0
    %97 = vmatpush1.msra.mxu0 0.0
    %98 = vmatprep.subr.mxu0 0.0
    %99 = vmatpush1.msra.mxu0 0.0
    %100 = vmatprep.subr.mxu0 0.0
    %101 = vmatpush1.msra.mxu0 0.0
    %102 = vmatprep.subr.mxu0 0.0
    %103 = vmatpush1.msra.mxu0 0.0
    %104 = vmatprep.subr.mxu0 0.0
    %105 = vmatpush1.msra.mxu0 0.0
    %106 = vmatprep.subr.mxu0 0.0
    %107 = vmatpush1.msra.mxu0 0.0
    %108 = vmatprep.subr.mxu0 0.0
    %109 = vmatpush1.msra.mxu0 0.0
    %110 = vmatprep.subr.mxu0 0.0
    %111 = vmatpush1.msra.mxu0 0.0
    %112 = vmatprep.subr.mxu0 0.0
    %113 = vmatpush1.msra.mxu0 0.0
    %114 = vmatprep.subr.mxu0 0.0
    %115 = vmatpush1.msra.mxu0 0.0
    %116 = vmatprep.subr.mxu0 0.0
    %117 = vmatpush1.msra.mxu0 0.0
    %118 = vmatprep.subr.mxu0 0.0
    %119 = vmatpush1.msra.mxu0 0.0
    %120 = vmatprep.subr.mxu0 0.0
    %121 = vmatpush1.msra.mxu0 0.0
    %122 = vmatprep.subr.mxu0 0.0
    %123 = vmatpush1.msra.mxu0 0.0
    %124 = vmatprep.subr.mxu0 0.0
    %125 = vmatpush1.msra.mxu0 0.0
    %126 = vmatprep.subr.mxu0 0.0
    %127 = vmatpush1.msra.mxu0 0.0
    %128 = vmatprep.subr.mxu0 0.0
    %129 = vmatpush1.msra.mxu0 0.0
    %130 = vmatprep.subr.mxu0 0.0
    %131 = vmatpush1.msra.mxu0 0.0
    %132 = vmatprep.subr.mxu0 0.0
    %133 = vmatpush1.msra.mxu0 0.0
    %134 = vmatprep.subr.mxu0 0.0
    %135 = vmatpush1.msra.mxu0 0.0
    %136 = vmatprep.subr.mxu0 0.0
    %137 = vmatpush1.msra.mxu0 0.0
    %138 = vmatprep.subr.mxu0 0.0
    %139 = vmatpush1.msra.mxu0 0.0
    %140 = vmatprep.subr.mxu0 0.0
    %141 = vmatpush1.msra.mxu0 0.0
    %142 = vmatprep.subr.mxu0 0.0
    %143 = vmatpush1.msra.mxu0 0.0
    %144 = vmatprep.mubr.f32.mxu0 0.0
    %145 = vmatmul.mubr.f32.gmra.mrb[0].mxu0 %v78
    %v146 = vpop.f32.mrb[0].mxu0
    %v147 = vadd.f32 %v69, %v146
    %v148 = vpop.f32.mrb[0].mxu0
    %v149 = vadd.f32 %v73, %v148
    %150 = vdwg.mxu0
    %v151 = vld [vmem:[#allocation2] sm:$0xff]
    %v152 = vmul.f32 %v151, %v147
    %v153 = vadd.f32 %v152, %v149
    %154 = vst [vmem:[#allocation8] sm:$0xff] %v153
    // Predicated region
    $region30: #{tpu_custom_call.1} parent=1 // pred_check
      _
    $region31: #{tpu_custom_call.1} parent=1 // pred_check_branch
      %156 = sbr.rel (0) target = $region33
    $region32: #{tpu_custom_call.1} parent=1 // pred_region
      %s158 = ssub.s32 128, 128
      %159 = vsyncadd [#allocation4], %s158
      %s161 = sshll.u32 [#allocation8], 4
      %s162 = int_to_ptr.vmem [resolvable:$true] %s161
      %164 = dma.vmem_to_hbm [thread:$0]  %s162, 128, %s4, [#allocation4]
    $region33: #{tpu_custom_call.1} parent=1 // pred_fallthru
      _
    // Predicated region
    $region34: #{tpu_custom_call.1} parent=1 // pred_check
      _
    $region35: #{tpu_custom_call.1} parent=1 // pred_check_branch
      %166 = sbr.rel (0) target = $region37
    $region36: #{tpu_custom_call.1} parent=1 // pred_region
      %167 = dma.done [#allocation4], 128
    $region37: #{tpu_custom_call.1} parent=1 // pred_fallthru
      _
    %168 = vsyncpa [#allocation3], 1
    %169 = vsyncpa [#allocation6], 1
    %170 = vsyncpa [#allocation4], 1

</llo_original>
